<compile_context>
chip_gen: v5e
topology: v5e:2x2
jax: 0.10.0
libtpu: 0.0.40
codegen_flags: <defaults>
</compile_context>

<pallas_src>
import jax
import jax.numpy as jnp
from jax import lax
from jax.experimental import pallas as pl
from jax.experimental.pallas import tpu as pltpu

EPS = 1e-10


def _pick_s_tile(S, BD, itemsize):
    """Rows of the [S, B*D] support slab processed per grid step."""
    if S <= 8:
        return S                                   # one full-extent block
    # >= 2 grid steps (v7x megacore) with large, sublane(8)-aligned tiles.
    tile = ((((S + 1) // 2) + 7) // 8) * 8
    tile = min(tile, 1024)
    # Cap double-buffered input footprint to ~8 MiB (fits v7x 64 MiB VMEM with
    # lots of headroom, and well under v5e/v6e scoped-VMEM defaults).
    vmem_rows = max(8, (8 * 1024 * 1024) // (2 * BD * itemsize))
    vmem_rows = max(8, (vmem_rows // 8) * 8)
    return max(8, min(tile, vmem_rows))


def distance_network(support_set, input_image, *, s_tile=None):
    """support_set: [S, B, D], input_image: [B, D] -> cosine similarities [S, B] (f32)."""
    S, B, D = support_set.shape
    assert input_image.shape == (B, D)
    BD = B * D

    # Free (contiguous) collapses -- no HBM relayout, no padding copy.
    sup = support_set.reshape(S, BD)
    x = input_image.reshape(1, BD)

    if s_tile is None:
        s_tile = _pick_s_tile(S, BD, jnp.dtype(support_set.dtype).itemsize)

    def kernel(support_ref, input_ref, out_ref):
        # support_ref: [s_tile, B*D] (native dtype), input_ref: [1, B*D],
        # out_ref: [s_tile, B] f32.
        s = support_ref[...].astype(jnp.float32)          # cast in-vreg, f32 accum
        xv = input_ref[...].astype(jnp.float32)            # [1, B*D] broadcast
        prod = s * xv                                       # dot-product terms (VPU)
        sq = s * s                                          # magnitude terms  (VPU)
        dots, ssqs = [], []
        for b in range(B):                                  # static lane-segment reduces
            sl = slice(b * D, (b + 1) * D)
            dots.append(jnp.sum(prod[:, sl], axis=-1, keepdims=True))
            ssqs.append(jnp.sum(sq[:, sl], axis=-1, keepdims=True))
        dot = jnp.concatenate(dots, axis=-1)                # [s_tile, B]
        sum_sq = jnp.concatenate(ssqs, axis=-1)             # [s_tile, B]
        mag = lax.rsqrt(jnp.maximum(sum_sq, EPS))           # clamp(eps, inf).rsqrt(), EUP
        out_ref[...] = dot * mag

    out = pl.pallas_call(
        kernel,
        out_shape=jax.ShapeDtypeStruct((S, B), jnp.float32),
        grid_spec=pl.GridSpec(
            grid=(pl.cdiv(S, s_tile),),
            in_specs=[
                pl.BlockSpec((s_tile, BD), lambda i: (i, 0)),   # dense support rows
                pl.BlockSpec((1, BD), lambda i: (0, 0)),        # target embedding (DMA'd once)
            ],
            out_specs=pl.BlockSpec((s_tile, B), lambda i: (i, 0)),
        ),
        compiler_params=pltpu.CompilerParams(
            dimension_semantics=("parallel",),
        ),
    )(sup, x)
    return out


def _reference(support_set, input_image):
    # Pure-VPU f32 reference (mirrors the PyTorch eps-clamped cosine similarity).
    s = support_set.astype(jnp.float32)
    x = input_image.astype(jnp.float32)
    dot = jnp.sum(s * x[None, :, :], axis=-1)
    sum_sq = jnp.sum(s * s, axis=-1)
    return dot * lax.rsqrt(jnp.maximum(sum_sq, EPS))


if __name__ == "__main__":
    # Small shapes consistent with the module: seq=8, batch=2, embedding=64.
    S, B, D = 8, 2, 64
    key = jax.random.PRNGKey(0)
    k_s, k_x = jax.random.split(key)
    support_set = jax.random.normal(k_s, (S, B, D), dtype=jnp.float32)
    input_image = jax.random.normal(k_x, (B, D), dtype=jnp.float32)

    out = jax.block_until_ready(distance_network(support_set, input_image))

    ref = _reference(support_set, input_image)
    assert out.shape == (S, B)
    assert jnp.allclose(out, ref, atol=1e-5, rtol=1e-5), "mismatch vs reference"

    print("KERNEL_OK")
</pallas_src>

<mosaic_0001>
module attributes {stable_mosaic.version = 11 : i64} {
  func.func @kernel(%arg0: i32, %arg1: memref<8x128xf32, #tpu.memory_space<vmem>>, %arg2: memref<1x128xf32, #tpu.memory_space<vmem>>, %arg3: memref<8x2xf32, #tpu.memory_space<vmem>>) attributes {dimension_semantics = [#tpu.dimension_semantics<parallel>], iteration_bounds = array<i64: 1>, scalar_prefetch = 0 : i64, scratch_operands = 0 : i64, tpu.core_type = #tpu.core_type<tc>, window_params = [{transform_indices = @transform_0, window_bounds = array<i64: 8, 128>}, {pipeline_mode = #tpu.pipeline_mode<synchronous>, transform_indices = @transform_1, window_bounds = array<i64: 1, 128>}, {transform_indices = @transform_2, window_bounds = array<i64: 8, 2>}]} {
    %c0 = arith.constant 0 : index
    %c0_0 = arith.constant 0 : index
    %0 = vector.load %arg1[%c0, %c0_0] : memref<8x128xf32, #tpu.memory_space<vmem>>, vector<8x128xf32>
    %c0_1 = arith.constant 0 : index
    %c0_2 = arith.constant 0 : index
    %1 = vector.load %arg2[%c0_1, %c0_2] : memref<1x128xf32, #tpu.memory_space<vmem>>, vector<1x128xf32>
    %2 = vector.broadcast %1 : vector<1x128xf32> to vector<8x128xf32>
    %3 = arith.mulf %0, %2 : vector<8x128xf32>
    %4 = arith.mulf %0, %0 : vector<8x128xf32>
    %5 = vector.extract_strided_slice %3 {offsets = [0, 0], sizes = [8, 64], strides = [1, 1]} : vector<8x128xf32> to vector<8x64xf32>
    %cst = arith.constant dense<0.000000e+00> : vector<8xf32>
    %6 = vector.multi_reduction <add>, %5, %cst [1] : vector<8x64xf32> to vector<8xf32>
    %7 = vector.shape_cast %6 : vector<8xf32> to vector<8x1xf32>
    %8 = vector.extract_strided_slice %4 {offsets = [0, 0], sizes = [8, 64], strides = [1, 1]} : vector<8x128xf32> to vector<8x64xf32>
    %cst_3 = arith.constant dense<0.000000e+00> : vector<8xf32>
    %9 = vector.multi_reduction <add>, %8, %cst_3 [1] : vector<8x64xf32> to vector<8xf32>
    %10 = vector.shape_cast %9 : vector<8xf32> to vector<8x1xf32>
    %11 = vector.extract_strided_slice %3 {offsets = [0, 64], sizes = [8, 64], strides = [1, 1]} : vector<8x128xf32> to vector<8x64xf32>
    %cst_4 = arith.constant dense<0.000000e+00> : vector<8xf32>
    %12 = vector.multi_reduction <add>, %11, %cst_4 [1] : vector<8x64xf32> to vector<8xf32>
    %13 = vector.shape_cast %12 : vector<8xf32> to vector<8x1xf32>
    %14 = vector.extract_strided_slice %4 {offsets = [0, 64], sizes = [8, 64], strides = [1, 1]} : vector<8x128xf32> to vector<8x64xf32>
    %cst_5 = arith.constant dense<0.000000e+00> : vector<8xf32>
    %15 = vector.multi_reduction <add>, %14, %cst_5 [1] : vector<8x64xf32> to vector<8xf32>
    %16 = vector.shape_cast %15 : vector<8xf32> to vector<8x1xf32>
    %17 = tpu.concatenate %7, %13 in 1 : vector<8x1xf32>, vector<8x1xf32> -> vector<8x2xf32>
    %18 = tpu.concatenate %10, %16 in 1 : vector<8x1xf32>, vector<8x1xf32> -> vector<8x2xf32>
    %cst_6 = arith.constant 1.000000e-10 : f32
    %19 = vector.broadcast %cst_6 : f32 to vector<8x2xf32>
    %20 = arith.maximumf %18, %19 : vector<8x2xf32>
    %21 = math.rsqrt %20 : vector<8x2xf32>
    %22 = arith.mulf %17, %21 : vector<8x2xf32>
    %c0_7 = arith.constant 0 : index
    %c0_8 = arith.constant 0 : index
    %23 = vector.load %arg3[%c0_7, %c0_8] : memref<8x2xf32, #tpu.memory_space<vmem>>, vector<8x2xf32>
    tpu.vector_store %arg3[%c0_7, %c0_8], %22 {strides = array<i32>} : memref<8x2xf32, #tpu.memory_space<vmem>>, vector<8x2xf32>,
    return
  }
  func.func @transform_0(%arg0: i32) -> (i32, i32) {
    %c0_i32 = arith.constant 0 : i32
    %c0_i32_0 = arith.constant 0 : i32
    return %arg0, %c0_i32 : i32, i32
  }
  func.func @transform_1(%arg0: i32) -> (i32, i32) {
    %c0_i32 = arith.constant 0 : i32
    %c0_i32_0 = arith.constant 0 : i32
    %c0_i32_1 = arith.constant 0 : i32
    return %c0_i32, %c0_i32_0 : i32, i32
  }
  func.func @transform_2(%arg0: i32) -> (i32, i32) {
    %c0_i32 = arith.constant 0 : i32
    %c0_i32_0 = arith.constant 0 : i32
    return %arg0, %c0_i32 : i32, i32
  }
}

</mosaic_0001>

<llo_original>
// kernel: tpu_custom_call.1
$region0: #{tpu_custom_call.1}
  #allocation0 [shape = 'u32[]', space=smem, size = 0x4, offset = 0x4, fixed_abs, tag = 'smem constant byte address 0x4 - core index']
  #allocation1 [shape = 'u32[72,128]{1,0:T(1,128)}', space=vmem, size = 0x9000, scoped, tag = 'internal scratch']
  %s0 = inlined_call_operand.hbm [shape: f32[8,128], index: 0, kind: input, shape index: {}]
  %s1 = inlined_call_operand.hbm [shape: f32[1,128], index: 1, kind: input, shape index: {}]
  %s2 = inlined_call_operand.vmem [shape: f32[8,2], index: 2, kind: output, shape index: {}]
  %s3 = sld [smem:[#allocation0]]
  $region26: #{tpu_custom_call.1} parent=0
    _
  %s5 = ssub.s32 1, %s3
  %s6 = scalar_select 0, %s5, %s3
  $region1: #{tpu_custom_call.1} parent=0
    #allocation2 [shape = 'u8[4096]{0}', space=vmem, size = 0x1000, scoped, tag = 'input window, operand 0, single buffered']
    #allocation3 [shape = 's32[1]{0}', space=sflag, size = 0x4, scoped, tag = 'scoped memory for tpu_custom_call.1']
    #allocation4 [shape = 'u8[512]{0}', space=vmem, size = 0x400, scoped, tag = 'input window, operand 1, single buffered']
    #allocation5 [shape = 's32[1]{0}', space=sflag, size = 0x4, scoped, tag = 'scoped memory for tpu_custom_call.1']
    %7 = vsyncpa [#allocation3], 0
    %8 = vsyncpa [#allocation5], 0
    // Predicated region
    $region2: #{tpu_custom_call.1} parent=1 // pred_check
      _
    $region3: #{tpu_custom_call.1} parent=1 // pred_check_branch
      %10 = sbr.rel (0) target = $region5
    $region4: #{tpu_custom_call.1} parent=1 // pred_region
      %12 = vsyncadd [#allocation3], 0
      %s14 = sshll.u32 %s0, 4
      %s15 = int_to_ptr.hbm [resolvable:$true] %s14
      %s16 = sshll.u32 [#allocation2], 4
      %s17 = int_to_ptr.vmem [resolvable:$true] %s16
      %19 = dma.hbm_to_vmem [thread:$0]  %s15, 128, %s17, [#allocation3]
    $region5: #{tpu_custom_call.1} parent=1 // pred_fallthru
      _
    // Predicated region
    $region6: #{tpu_custom_call.1} parent=1 // pred_check
      _
    $region7: #{tpu_custom_call.1} parent=1 // pred_check_branch
      %21 = sbr.rel (0) target = $region9
    $region8: #{tpu_custom_call.1} parent=1 // pred_region
      %23 = vsyncadd [#allocation5], 0
      %s25 = sshll.u32 %s1, 4
      %s26 = int_to_ptr.hbm [resolvable:$true] %s25
      %s27 = sshll.u32 [#allocation4], 4
      %s28 = int_to_ptr.vmem [resolvable:$true] %s27
      %30 = dma.hbm_to_vmem [thread:$0]  %s26, 16, %s28, [#allocation5]
    $region9: #{tpu_custom_call.1} parent=1 // pred_fallthru
      _
    // Predicated region
    $region10: #{tpu_custom_call.1} parent=1 // pred_check
      _
    $region11: #{tpu_custom_call.1} parent=1 // pred_check_branch
      %32 = sbr.rel (0) target = $region13
    $region12: #{tpu_custom_call.1} parent=1 // pred_region
      %34 = dma.done [#allocation3], 128
    $region13: #{tpu_custom_call.1} parent=1 // pred_fallthru
      _
    // Predicated region
    $region14: #{tpu_custom_call.1} parent=1 // pred_check
      _
    $region15: #{tpu_custom_call.1} parent=1 // pred_check_branch
      %36 = sbr.rel (0) target = $region17
    $region16: #{tpu_custom_call.1} parent=1 // pred_region
      %38 = dma.done [#allocation5], 16
    $region17: #{tpu_custom_call.1} parent=1 // pred_fallthru
      _
    %v39 = vld [vmem:[#allocation2] sm:$0xff]
    %v40 = vld [vmem:[#allocation4] sm:$0x1]
    %v42 = vperm.slane %v40, 0
    %v44 = vmul.f32 %v39, %v42
    %v45 = vmul.f32 %v39, %v39
    %vm46 = vcmask 523264
    %v47 = vsel %vm46, %v44, 0.0
    %48 = vadd.xlane.f32.xlu0 %v47
    %v49 = vpop.xlane.xlu0 %48
    %v50 = vsel %vm46, %v45, 0.0
    %51 = vadd.xlane.f32.xlu0 %v50
    %v52 = vpop.xlane.xlu0 %51
    %54 = vrot.lane.b32.xlu0 %v44, 64
    %v55 = vpop.permute.xlu0 %54
    %v57 = vsel %vm46, %v55, 0.0
    %58 = vadd.xlane.f32.xlu0 %v57
    %v59 = vpop.xlane.xlu0 %58
    %61 = vrot.lane.b32.xlu0 %v45, 64
    %v62 = vpop.permute.xlu0 %61
    %v64 = vsel %vm46, %v62, 0.0
    %65 = vadd.xlane.f32.xlu0 %v64
    %v66 = vpop.xlane.xlu0 %65
    %vm67 = vcmask 7168
    %v68 = vsel %vm67, %v49, %v59
    %v69 = vsel %vm67, %v52, %v66
    %v70 = vmax.f32 %v69, 1e-10
    %v71 = vrsqrt.pop %v70
    %v72 = vmul.f32 %v71, %v70
    %v73 = vmul.f32 %v72, %v71
    %v74 = vmul.f32 0.5, %v73
    %v75 = vsub.f32 1.5, %v74
    %v76 = vmul.f32 %v71, %v75
    %vm77 = vweird.f32 %v70
    %vm78 = vweird.f32 %v71
    %vm79 = vmor %vm77, %vm78
    %v80 = vsel %vm79, %v71, %v76
    %v81 = vmul.f32 %v68, %v80
    %vm82 = vcmask 15360
    %83 = vst.msk [vmem:[%s2] sm:$0xff] %vm82, %v81
    // Predicated region
    $region18: #{tpu_custom_call.1} parent=1 // pred_check
      _
    $region19: #{tpu_custom_call.1} parent=1 // pred_check_branch
      %85 = sbr.rel (0) target = $region21
    $region20: #{tpu_custom_call.1} parent=1 // pred_region
      _
    $region21: #{tpu_custom_call.1} parent=1 // pred_fallthru
      _
    // Predicated region
    $region22: #{tpu_custom_call.1} parent=1 // pred_check
      _
    $region23: #{tpu_custom_call.1} parent=1 // pred_check_branch
      %87 = sbr.rel (0) target = $region25
    $region24: #{tpu_custom_call.1} parent=1 // pred_region
      _
    $region25: #{tpu_custom_call.1} parent=1 // pred_fallthru
      _
    %88 = vsyncpa [#allocation3], 1
    %89 = vsyncpa [#allocation5], 1

</llo_original>
